<compile_context>
chip_gen: v5e
topology: v5e:2x2
jax: 0.10.0
libtpu: 0.0.40
codegen_flags: <defaults>
</compile_context>

<pallas_src>
import functools

import jax
import jax.numpy as jnp
from jax.experimental import pallas as pl
from jax.experimental.pallas import tpu as pltpu

_MB = 1024 * 1024


def _round_up(n, m):
    return ((n + m - 1) // m) * m


def _vmem_capacity_bytes():
    try:
        return int(pltpu.get_tpu_info().vmem_capacity_bytes)
    except Exception:
        return 64 * _MB  # conservative default (v7x)


def _plan_tiles(B, H, O, in_bytes, out_bytes, w_bytes, block_b, kd):
    """Pick a batch tile that fits VMEM (weights + f32 temporaries) and the
    vmem_limit_bytes to hand the compiler."""
    vmem_cap = _vmem_capacity_bytes()
    sublane = max(8, 32 // in_bytes)

    n_layers = 2 if kd else 1
    # Resident (constant-index) blocks are still double-buffered by the pipeline.
    weight_bytes = 2 * n_layers * (H * O + O) * w_bytes
    if weight_bytes > vmem_cap // 2:
        # TODO(synk): K/O-tiled path (online LSE) for weights this large.
        raise NotImplementedError(
            "resident student+teacher weights exceed the VMEM budget; "
            "K/O tiling not implemented yet")

    def act_bytes(tb):
        io = 2 * tb * H * in_bytes + 2 * tb * O * out_bytes + 2 * 8 * 128 * 4
        temps = (10 if kd else 2) * tb * O * 4  # in-kernel f32 live values
        return io + temps

    tb = max(min(block_b, B), sublane)
    if tb >= 256:
        tb = (tb // 256) * 256          # fill full MXU row groups (v6e/v7x)
    tb = _round_up(tb, sublane)

    budget = int(0.45 * vmem_cap)       # headroom for compiler internals
    while tb > sublane and weight_bytes + act_bytes(tb) > budget:
        tb = _round_up(tb // 2, sublane)

    vmem_limit = min(int(0.9 * vmem_cap),
                     max(32 * _MB, weight_bytes + act_bytes(tb) + 4 * _MB))
    return tb, vmem_limit


def _kd_kernel(x_ref, ws_ref, bs_ref, wt_ref, bt_ref, org_ref, psum_ref, *,
               true_b, tile_b, needs_mask):
    pid = pl.program_id(0)
    x = x_ref[...]

    # Two resident-weight dots (f32 MXU accumulation); split never crosses a
    # lane tile because student / teacher outputs are separate operands.
    s = jnp.dot(x, ws_ref[...], preferred_element_type=jnp.float32)
    s = s + bs_ref[...].astype(jnp.float32)
    t = jnp.dot(x, wt_ref[...], preferred_element_type=jnp.float32)
    t = t + bt_ref[...].astype(jnp.float32)

    # org_output = raw student output (what forward() returns).
    org_ref[...] = s.astype(org_ref.dtype)

    # Student log-softmax (exp pass #1, only for the denominator).
    zs_s = s - jnp.max(s, axis=-1, keepdims=True)
    ls = zs_s - jnp.log(jnp.sum(jnp.exp(zs_s), axis=-1, keepdims=True))

    # Teacher: fused softmax + log-softmax (exp pass #2, shared).
    zs_t = t - jnp.max(t, axis=-1, keepdims=True)
    e_t = jnp.exp(zs_t)
    sum_t = jnp.sum(e_t, axis=-1, keepdims=True)
    lse_t = jnp.log(sum_t)

    # KL(teacher || student) summed over the last dim, normalized per row with
    # a single approximate reciprocal (EUP slot) instead of a per-element
    # divide or a third exp pass:
    #   sum_j p_t * (lt - ls) = (1/sum_t) * sum_j e_t * (zs_t - lse_t - ls)
    g = e_t * (zs_t - lse_t - ls)
    row_kl = jnp.sum(g, axis=-1, keepdims=True) * pl.reciprocal(
        sum_t, approx=True)                                   # (tile_b, 1)

    if needs_mask:
        # Zero rows that only exist because the trailing block is partial.
        row = pid * tile_b + jax.lax.broadcasted_iota(jnp.int32,
                                                      row_kl.shape, 0)
        row_kl = jnp.where(row < true_b, row_kl, 0.0)

    # Per-tile partial sum, broadcast over an (8,128)-dense block so the batch
    # axis can stay "parallel" (no shared accumulator across grid steps).
    psum_ref[...] = jnp.full(psum_ref.shape, jnp.sum(row_kl), jnp.float32)


def _student_kernel(x_ref, ws_ref, bs_ref, org_ref):
    y = jnp.dot(x_ref[...], ws_ref[...], preferred_element_type=jnp.float32)
    org_ref[...] = (y + bs_ref[...].astype(jnp.float32)).astype(org_ref.dtype)


def kd_module_wrapper_forward(x, ws, bs, wt, bt, *, kd_enabled=True,
                              block_b=256, kd_last_comparison=None):
    """Returns (org_output, kd_last_comparison), mirroring the torch module.

    x  : [B, H]  activations (f32 or bf16)
    ws : [H, O]  student weight,  bs : [1, O] student bias
    wt : [H, O]  teacher weight,  bt : [1, O] teacher bias
    kd_last_comparison : current buffer value; returned untouched when
                         kd_enabled is False (matching the torch buffer).
    """
    B, H = x.shape
    O = ws.shape[1]
    out_dtype = x.dtype
    in_bytes = jnp.dtype(x.dtype).itemsize
    w_bytes = jnp.dtype(ws.dtype).itemsize

    tile_b, vmem_limit = _plan_tiles(B, H, O, in_bytes, in_bytes, w_bytes,
                                     block_b, kd_enabled)
    num_tiles = pl.cdiv(B, tile_b)
    grid = (num_tiles,)

    x_spec = pl.BlockSpec((tile_b, H), lambda i: (i, 0))
    org_spec = pl.BlockSpec((tile_b, O), lambda i: (i, 0))
    w_spec = pl.BlockSpec((H, O), lambda i: (0, 0))   # resident
    b_spec = pl.BlockSpec((1, O), lambda i: (0, 0))   # resident

    if not kd_enabled:
        org = pl.pallas_call(
            _student_kernel,
            out_shape=jax.ShapeDtypeStruct((B, O), out_dtype),
            grid=grid,
            in_specs=[x_spec, w_spec, b_spec],
            out_specs=org_spec,
            compiler_params=pltpu.CompilerParams(
                dimension_semantics=("parallel",),
                vmem_limit_bytes=vmem_limit),
        )(x, ws, bs)
        comp = (kd_last_comparison if kd_last_comparison is not None
                else jnp.zeros((1,), jnp.float32))
        return org, comp

    needs_mask = (num_tiles * tile_b != B)
    kernel = functools.partial(_kd_kernel, true_b=B, tile_b=tile_b,
                               needs_mask=needs_mask)

    org, psum = pl.pallas_call(
        kernel,
        out_shape=(jax.ShapeDtypeStruct((B, O), out_dtype),
                   jax.ShapeDtypeStruct((num_tiles, 8, 128), jnp.float32)),
        grid=grid,
        in_specs=[x_spec, w_spec, b_spec, w_spec, b_spec],
        out_specs=(org_spec,
                   pl.BlockSpec((1, 8, 128), lambda i: (i, 0, 0))),
        compiler_params=pltpu.CompilerParams(
            # Per-tile partial sums -> no cross-step accumulator -> the batch
            # axis is safely "parallel" (megacore sharding on v7x).
            dimension_semantics=("parallel",),
            vmem_limit_bytes=vmem_limit),
    )(x, ws, bs, wt, bt)

    comp = (jnp.sum(psum[:, 0, 0]) / jnp.float32(B * O)).reshape((1,))
    return org, comp


def _reference(x, ws, bs, wt, bt):
    s = x @ ws + bs
    t = x @ wt + bt
    ls = jax.nn.log_softmax(s, axis=-1)
    lt = jax.nn.log_softmax(t, axis=-1)
    kl = jnp.exp(lt) * (lt - ls)
    return s, jnp.mean(kl).reshape((1,))


if __name__ == "__main__":
    H, O = 32, 128

    key = jax.random.PRNGKey(0)
    kx, kws, kbs, kwt, kbt = jax.random.split(key, 5)

    # ------- Test 1: f32, multi-tile grid (B=48, tile_b=16 -> 3 partial sums)
    B = 48
    x = jax.random.normal(kx, (B, H), jnp.float32)
    ws = jax.random.normal(kws, (H, O), jnp.float32) * 0.1
    bs = jax.random.normal(kbs, (1, O), jnp.float32) * 0.1
    wt = jax.random.normal(kwt, (H, O), jnp.float32) * 0.1
    bt = jax.random.normal(kbt, (1, O), jnp.float32) * 0.1

    org, comp = kd_module_wrapper_forward(x, ws, bs, wt, bt,
                                          kd_enabled=True, block_b=16)
    jax.block_until_ready(org)
    jax.block_until_ready(comp)

    ref_org, ref_comp = _reference(x, ws, bs, wt, bt)
    assert org.shape == (B, O) and comp.shape == (1,)
    assert jnp.allclose(org, ref_org, atol=1e-4, rtol=1e-4)
    # comp tolerance accounts for the approximate EUP reciprocal.
    assert jnp.allclose(comp, ref_comp, atol=1e-3, rtol=1e-2)

    # ------- Test 2: bf16 activations/weights, ragged batch (B=20, tile_b=32)
    Bb = 20
    xb = x[:Bb].astype(jnp.bfloat16)
    wsb, bsb = ws.astype(jnp.bfloat16), bs.astype(jnp.bfloat16)
    wtb, btb = wt.astype(jnp.bfloat16), bt.astype(jnp.bfloat16)

    orgb, compb = kd_module_wrapper_forward(xb, wsb, bsb, wtb, btb,
                                            kd_enabled=True)
    jax.block_until_ready(orgb)
    jax.block_until_ready(compb)

    rofb, rcfb = _reference(xb.astype(jnp.float32), wsb.astype(jnp.float32),
                            bsb.astype(jnp.float32), wtb.astype(jnp.float32),
                            btb.astype(jnp.float32))
    assert orgb.dtype == jnp.bfloat16 and orgb.shape == (Bb, O)
    assert jnp.allclose(orgb.astype(jnp.float32), rofb, atol=3e-2, rtol=3e-2)
    assert jnp.allclose(compb, rcfb, atol=2e-2, rtol=2e-2)

    # ------- Test 3: kd_enabled=False path (student layer only, buffer kept)
    prev_buf = jnp.full((1,), 0.5, jnp.float32)
    org_only, comp_keep = kd_module_wrapper_forward(
        x, ws, bs, wt, bt, kd_enabled=False, block_b=16,
        kd_last_comparison=prev_buf)
    jax.block_until_ready(org_only)
    assert jnp.allclose(org_only, ref_org, atol=1e-4, rtol=1e-4)
    assert jnp.allclose(comp_keep, prev_buf)   # buffer untouched

    print("KERNEL_OK")
</pallas_src>

<mosaic_0001>
module attributes {stable_mosaic.version = 11 : i64} {
  func.func @_kd_kernel(%arg0: i32, %arg1: memref<16x32xf32, #tpu.memory_space<vmem>>, %arg2: memref<32x128xf32, #tpu.memory_space<vmem>>, %arg3: memref<1x128xf32, #tpu.memory_space<vmem>>, %arg4: memref<32x128xf32, #tpu.memory_space<vmem>>, %arg5: memref<1x128xf32, #tpu.memory_space<vmem>>, %arg6: memref<16x128xf32, #tpu.memory_space<vmem>>, %arg7: memref<1x8x128xf32, #tpu.memory_space<vmem>>) attributes {dimension_semantics = [#tpu.dimension_semantics<parallel>], iteration_bounds = array<i64: 3>, scalar_prefetch = 0 : i64, scratch_operands = 0 : i64, tpu.core_type = #tpu.core_type<tc>, window_params = [{transform_indices = @transform_0, window_bounds = array<i64: 16, 32>}, {pipeline_mode = #tpu.pipeline_mode<synchronous>, transform_indices = @transform_1, window_bounds = array<i64: 32, 128>}, {pipeline_mode = #tpu.pipeline_mode<synchronous>, transform_indices = @transform_2, window_bounds = array<i64: 1, 128>}, {pipeline_mode = #tpu.pipeline_mode<synchronous>, transform_indices = @transform_3, window_bounds = array<i64: 32, 128>}, {pipeline_mode = #tpu.pipeline_mode<synchronous>, transform_indices = @transform_4, window_bounds = array<i64: 1, 128>}, {transform_indices = @transform_5, window_bounds = array<i64: 16, 128>}, {transform_indices = @transform_6, window_bounds = array<i64: 1, 8, 128>}]} {
    %c0 = arith.constant 0 : index
    %c0_0 = arith.constant 0 : index
    %0 = vector.load %arg1[%c0, %c0_0] : memref<16x32xf32, #tpu.memory_space<vmem>>, vector<16x32xf32>
    %c0_1 = arith.constant 0 : index
    %c0_2 = arith.constant 0 : index
    %1 = vector.load %arg2[%c0_1, %c0_2] : memref<32x128xf32, #tpu.memory_space<vmem>>, vector<32x128xf32>
    %cst = arith.constant dense<0.000000e+00> : vector<16x128xf32>
    %2 = tpu.matmul %0, %1, %cst {dimension_numbers = #tpu.dot_dimension_numbers<[1], [0], [0], [1], [0, 0, 1, 1], [], []>} : vector<16x32xf32>, vector<32x128xf32>, vector<16x128xf32> -> vector<16x128xf32>
    %c0_3 = arith.constant 0 : index
    %c0_4 = arith.constant 0 : index
    %3 = vector.load %arg3[%c0_3, %c0_4] : memref<1x128xf32, #tpu.memory_space<vmem>>, vector<1x128xf32>
    %4 = vector.broadcast %3 : vector<1x128xf32> to vector<16x128xf32>
    %5 = arith.addf %2, %4 : vector<16x128xf32>
    %c0_5 = arith.constant 0 : index
    %c0_6 = arith.constant 0 : index
    %6 = vector.load %arg4[%c0_5, %c0_6] : memref<32x128xf32, #tpu.memory_space<vmem>>, vector<32x128xf32>
    %cst_7 = arith.constant dense<0.000000e+00> : vector<16x128xf32>
    %7 = tpu.matmul %0, %6, %cst_7 {dimension_numbers = #tpu.dot_dimension_numbers<[1], [0], [0], [1], [0, 0, 1, 1], [], []>} : vector<16x32xf32>, vector<32x128xf32>, vector<16x128xf32> -> vector<16x128xf32>
    %c0_8 = arith.constant 0 : index
    %c0_9 = arith.constant 0 : index
    %8 = vector.load %arg5[%c0_8, %c0_9] : memref<1x128xf32, #tpu.memory_space<vmem>>, vector<1x128xf32>
    %9 = vector.broadcast %8 : vector<1x128xf32> to vector<16x128xf32>
    %10 = arith.addf %7, %9 : vector<16x128xf32>
    %c0_10 = arith.constant 0 : index
    %c0_11 = arith.constant 0 : index
    %11 = vector.load %arg6[%c0_10, %c0_11] : memref<16x128xf32, #tpu.memory_space<vmem>>, vector<16x128xf32>
    tpu.vector_store %arg6[%c0_10, %c0_11], %5 {strides = array<i32>} : memref<16x128xf32, #tpu.memory_space<vmem>>, vector<16x128xf32>,
    %cst_12 = arith.constant dense<0xFF800000> : vector<16xf32>
    %12 = vector.multi_reduction <maximumf>, %5, %cst_12 [1] : vector<16x128xf32> to vector<16xf32>
    %13 = vector.shape_cast %12 : vector<16xf32> to vector<16x1xf32>
    %14 = vector.broadcast %13 : vector<16x1xf32> to vector<16x128xf32>
    %15 = arith.subf %5, %14 : vector<16x128xf32>
    %16 = math.exp %15 : vector<16x128xf32>
    %cst_13 = arith.constant dense<0.000000e+00> : vector<16xf32>
    %17 = vector.multi_reduction <add>, %16, %cst_13 [1] : vector<16x128xf32> to vector<16xf32>
    %18 = vector.shape_cast %17 : vector<16xf32> to vector<16x1xf32>
    %19 = math.log %18 : vector<16x1xf32>
    %20 = vector.broadcast %19 : vector<16x1xf32> to vector<16x128xf32>
    %21 = arith.subf %15, %20 : vector<16x128xf32>
    %cst_14 = arith.constant dense<0xFF800000> : vector<16xf32>
    %22 = vector.multi_reduction <maximumf>, %10, %cst_14 [1] : vector<16x128xf32> to vector<16xf32>
    %23 = vector.shape_cast %22 : vector<16xf32> to vector<16x1xf32>
    %24 = vector.broadcast %23 : vector<16x1xf32> to vector<16x128xf32>
    %25 = arith.subf %10, %24 : vector<16x128xf32>
    %26 = math.exp %25 : vector<16x128xf32>
    %cst_15 = arith.constant dense<0.000000e+00> : vector<16xf32>
    %27 = vector.multi_reduction <add>, %26, %cst_15 [1] : vector<16x128xf32> to vector<16xf32>
    %28 = vector.shape_cast %27 : vector<16xf32> to vector<16x1xf32>
    %29 = math.log %28 : vector<16x1xf32>
    %30 = vector.broadcast %29 : vector<16x1xf32> to vector<16x128xf32>
    %31 = arith.subf %25, %30 : vector<16x128xf32>
    %32 = arith.subf %31, %21 : vector<16x128xf32>
    %33 = arith.mulf %26, %32 : vector<16x128xf32>
    %cst_16 = arith.constant dense<0.000000e+00> : vector<16xf32>
    %34 = vector.multi_reduction <add>, %33, %cst_16 [1] : vector<16x128xf32> to vector<16xf32>
    %35 = vector.shape_cast %34 : vector<16xf32> to vector<16x1xf32>
    %36 = tpu.reciprocal %28 {approx = true} : vector<16x1xf32> -> vector<16x1xf32>
    %37 = arith.mulf %35, %36 : vector<16x1xf32>
    %38 = vector.shape_cast %37 : vector<16x1xf32> to vector<1x16x1xf32>
    %cst_17 = arith.constant dense<0.000000e+00> : vector<1xf32>
    %39 = vector.multi_reduction <add>, %38, %cst_17 [1, 2] : vector<1x16x1xf32> to vector<1xf32>
    %40 = vector.shape_cast %39 : vector<1xf32> to vector<1x1x1xf32>
    %41 = vector.extract %40[0, 0, 0] : f32 from vector<1x1x1xf32>
    %42 = vector.broadcast %41 : f32 to vector<1x8x128xf32>
    %c0_18 = arith.constant 0 : index
    %c0_19 = arith.constant 0 : index
    %c0_20 = arith.constant 0 : index
    %43 = vector.load %arg7[%c0_18, %c0_19, %c0_20] : memref<1x8x128xf32, #tpu.memory_space<vmem>>, vector<1x8x128xf32>
    tpu.vector_store %arg7[%c0_18, %c0_19, %c0_20], %42 {strides = array<i32>} : memref<1x8x128xf32, #tpu.memory_space<vmem>>, vector<1x8x128xf32>,
    return
  }
  func.func @transform_0(%arg0: i32) -> (i32, i32) {
    %c0_i32 = arith.constant 0 : i32
    %c0_i32_0 = arith.constant 0 : i32
    return %arg0, %c0_i32 : i32, i32
  }
  func.func @transform_1(%arg0: i32) -> (i32, i32) {
    %c0_i32 = arith.constant 0 : i32
    %c0_i32_0 = arith.constant 0 : i32
    %c0_i32_1 = arith.constant 0 : i32
    return %c0_i32, %c0_i32_0 : i32, i32
  }
  func.func @transform_2(%arg0: i32) -> (i32, i32) {
    %c0_i32 = arith.constant 0 : i32
    %c0_i32_0 = arith.constant 0 : i32
    %c0_i32_1 = arith.constant 0 : i32
    return %c0_i32, %c0_i32_0 : i32, i32
  }
  func.func @transform_3(%arg0: i32) -> (i32, i32) {
    %c0_i32 = arith.constant 0 : i32
    %c0_i32_0 = arith.constant 0 : i32
    %c0_i32_1 = arith.constant 0 : i32
    return %c0_i32, %c0_i32_0 : i32, i32
  }
  func.func @transform_4(%arg0: i32) -> (i32, i32) {
    %c0_i32 = arith.constant 0 : i32
    %c0_i32_0 = arith.constant 0 : i32
    %c0_i32_1 = arith.constant 0 : i32
    return %c0_i32, %c0_i32_0 : i32, i32
  }
  func.func @transform_5(%arg0: i32) -> (i32, i32) {
    %c0_i32 = arith.constant 0 : i32
    %c0_i32_0 = arith.constant 0 : i32
    return %arg0, %c0_i32 : i32, i32
  }
  func.func @transform_6(%arg0: i32) -> (i32, i32, i32) {
    %c0_i32 = arith.constant 0 : i32
    %c0_i32_0 = arith.constant 0 : i32
    %c0_i32_1 = arith.constant 0 : i32
    return %arg0, %c0_i32, %c0_i32_0 : i32, i32, i32
  }
}

</mosaic_0001>

<llo_original>
// kernel: tpu_custom_call.1
$region0: #{tpu_custom_call.1}
  #allocation0 [shape = 'u32[]', space=smem, size = 0x4, offset = 0x4, fixed_abs, tag = 'smem constant byte address 0x4 - core index']
  #allocation1 [shape = 'u32[72,128]{1,0:T(1,128)}', space=vmem, size = 0x9000, scoped, tag = 'internal scratch']
  %s0 = inlined_call_operand.vmem [shape: f32[48,32], index: 0, kind: input, shape index: {}]
  %s1 = inlined_call_operand.vmem [shape: f32[32,128], index: 1, kind: input, shape index: {}]
  %s2 = inlined_call_operand.vmem [shape: f32[1,128], index: 2, kind: input, shape index: {}]
  %s3 = inlined_call_operand.vmem [shape: f32[32,128], index: 3, kind: input, shape index: {}]
  %s4 = inlined_call_operand.vmem [shape: f32[1,128], index: 4, kind: input, shape index: {}]
  %s5 = inlined_call_operand.hbm [shape: f32[48,128], index: 5, kind: output, shape index: {0}]
  %s6 = inlined_call_operand.hbm [shape: f32[3,8,128], index: 6, kind: output, shape index: {1}]
  %7 = xla_tuple %s5, %s6
  %s8 = sld [smem:[#allocation0]]
  $region61: #{tpu_custom_call.1} parent=0
    _
  %s10 = ssub.s32 1, %s8
  %s11 = scalar_select 0, %s10, %s8
  $region1: #{tpu_custom_call.1} parent=0
    #allocation2 [shape = 'u8[16384]{0}', space=vmem, size = 0x4000, scoped, tag = 'output window, operand 0']
    #allocation3 [shape = 's32[2]{0}', space=sflag, size = 0x8, scoped, tag = 'scoped memory for tpu_custom_call.1']
    #allocation4 [shape = 'u8[8192]{0}', space=vmem, size = 0x2000, scoped, tag = 'output window, operand 1']
    #allocation5 [shape = 's32[2]{0}', space=sflag, size = 0x8, scoped, tag = 'scoped memory for tpu_custom_call.1']
    %12 = vsyncpa [#allocation3], 0
    %s13 = scalar_lea.sflag [#allocation3], 1
    %14 = vsyncpa %s13, 0
    %15 = vsyncpa [#allocation5], 0
    %s16 = scalar_lea.sflag [#allocation5], 1
    %17 = vsyncpa %s16, 0
    loop: start=0, step=1, limit=5
    $region2: #{tpu_custom_call.1} parent=1 // loop_pre_header
      _
    $region3: #{tpu_custom_call.1} parent=1 // loop_header
      %s19 = sphi 0, %s23
      %p20 = scmp.ge.s32.totalorder %s19, 5
      %s29 = sphi 0, %s31
      %s32 = sphi 0, %s29
      %s33 = sphi 0, %s32
      %s49 = sphi 0, %s33
      %s53 = sphi 0, %s53
      %s55 = sphi 0, %s53
      %s56 = sphi 0, %s55
      %s70 = sphi 0, %s56
      %s74 = sphi 0, %s74
      %s76 = sphi 0, %s74
      %s77 = sphi 0, %s76
      %s91 = sphi 0, %s77
      %s95 = sphi 0, %s95
      %s97 = sphi 0, %s95
      %s98 = sphi 0, %s97
      %s112 = sphi 0, %s98
      %s116 = sphi 0, %s116
      %s118 = sphi 0, %s116
      %s119 = sphi 0, %s118
      %s133 = sphi 0, %s119
      %s139 = sphi 0, %s141
      %s142 = sphi 0, %s139
      %s143 = sphi 0, %s142
      %s159 = sphi 0, %s143
      %s165 = sphi 0, %s167
      %s168 = sphi 0, %s165
      %s169 = sphi 0, %s168
      %s185 = sphi 0, %s169
    $region4: #{tpu_custom_call.1} parent=1 // loop_header_branch
      %22 = sbr.rel (%p20) target = $region8
    $region5: #{tpu_custom_call.1} parent=1 // loop_body
      %s24 = ssub.s32 %s19, 1
      %s25 = ssub.s32 %s19, 2
      %s26 = sadd.s32 %s19, 1
      %s27 = ssub.s32 %s19, %s26
      %p28 = scmp.eq.s32.totalorder %s27, 0
      %s30 = sadd.s32 %s29, 1
      %s31 = scalar_select %p28, %s29, %s30
      %p34 = pneg %p28
      %p35 = scmp.eq.s32.totalorder %s19, 2
      %p36 = por %p34, %p35
      %p37 = scmp.ne.s32.totalorder %s29, %s32
      %p38 = scmp.eq.s32.totalorder %s19, 0
      %p39 = por %p37, %p38
      %p40 = scmp.ne.s32.totalorder %s29, %s32
      %p41 = scmp.eq.s32.totalorder %s24, 2
      %p42 = por %p40, %p41
      %p43 = scmp.ne.s32.totalorder %s32, %s33
      %p44 = scmp.eq.s32.totalorder %s24, 0
      %p45 = por %p43, %p44
      %p46 = scmp.ne.s32.totalorder %s32, %s33
      %p47 = scmp.eq.s32.totalorder %s25, 2
      %p48 = por %p46, %p47
      %p50 = scmp.ne.s32.totalorder %s33, %s49
      %p51 = scmp.eq.s32.totalorder %s25, 0
      %p52 = por %p50, %p51
      %s54 = sadd.s32 %s53, 1
      %p57 = scmp.eq.s32.totalorder %s19, 2
      %p58 = scmp.ne.s32.totalorder %s53, %s55
      %p59 = scmp.eq.s32.totalorder %s19, 0
      %p60 = por %p58, %p59
      %p61 = scmp.ne.s32.totalorder %s53, %s55
      %p62 = scmp.eq.s32.totalorder %s24, 2
      %p63 = por %p61, %p62
      %p64 = scmp.ne.s32.totalorder %s55, %s56
      %p65 = scmp.eq.s32.totalorder %s24, 0
      %p66 = por %p64, %p65
      %p67 = scmp.ne.s32.totalorder %s55, %s56
      %p68 = scmp.eq.s32.totalorder %s25, 2
      %p69 = por %p67, %p68
      %p71 = scmp.ne.s32.totalorder %s56, %s70
      %p72 = scmp.eq.s32.totalorder %s25, 0
      %p73 = por %p71, %p72
      %s75 = sadd.s32 %s74, 1
      %p78 = scmp.eq.s32.totalorder %s19, 2
      %p79 = scmp.ne.s32.totalorder %s74, %s76
      %p80 = scmp.eq.s32.totalorder %s19, 0
      %p81 = por %p79, %p80
      %p82 = scmp.ne.s32.totalorder %s74, %s76
      %p83 = scmp.eq.s32.totalorder %s24, 2
      %p84 = por %p82, %p83
      %p85 = scmp.ne.s32.totalorder %s76, %s77
      %p86 = scmp.eq.s32.totalorder %s24, 0
      %p87 = por %p85, %p86
      %p88 = scmp.ne.s32.totalorder %s76, %s77
      %p89 = scmp.eq.s32.totalorder %s25, 2
      %p90 = por %p88, %p89
      %p92 = scmp.ne.s32.totalorder %s77, %s91
      %p93 = scmp.eq.s32.totalorder %s25, 0
      %p94 = por %p92, %p93
      %s96 = sadd.s32 %s95, 1
      %p99 = scmp.eq.s32.totalorder %s19, 2
      %p100 = scmp.ne.s32.totalorder %s95, %s97
      %p101 = scmp.eq.s32.totalorder %s19, 0
      %p102 = por %p100, %p101
      %p103 = scmp.ne.s32.totalorder %s95, %s97
      %p104 = scmp.eq.s32.totalorder %s24, 2
      %p105 = por %p103, %p104
      %p106 = scmp.ne.s32.totalorder %s97, %s98
      %p107 = scmp.eq.s32.totalorder %s24, 0
      %p108 = por %p106, %p107
      %p109 = scmp.ne.s32.totalorder %s97, %s98
      %p110 = scmp.eq.s32.totalorder %s25, 2
      %p111 = por %p109, %p110
      %p113 = scmp.ne.s32.totalorder %s98, %s112
      %p114 = scmp.eq.s32.totalorder %s25, 0
      %p115 = por %p113, %p114
      %s117 = sadd.s32 %s116, 1
      %p120 = scmp.eq.s32.totalorder %s19, 2
      %p121 = scmp.ne.s32.totalorder %s116, %s118
      %p122 = scmp.eq.s32.totalorder %s19, 0
      %p123 = por %p121, %p122
      %p124 = scmp.ne.s32.totalorder %s116, %s118
      %p125 = scmp.eq.s32.totalorder %s24, 2
      %p126 = por %p124, %p125
      %p127 = scmp.ne.s32.totalorder %s118, %s119
      %p128 = scmp.eq.s32.totalorder %s24, 0
      %p129 = por %p127, %p128
      %p130 = scmp.ne.s32.totalorder %s118, %s119
      %p131 = scmp.eq.s32.totalorder %s25, 2
      %p132 = por %p130, %p131
      %p134 = scmp.ne.s32.totalorder %s119, %s133
      %p135 = scmp.eq.s32.totalorder %s25, 0
      %p136 = por %p134, %p135
      %s137 = ssub.s32 %s19, %s26
      %p138 = scmp.eq.s32.totalorder %s137, 0
      %s140 = sadd.s32 %s139, 1
      %s141 = scalar_select %p138, %s139, %s140
      %p144 = pneg %p138
      %p145 = scmp.eq.s32.totalorder %s19, 2
      %p146 = por %p144, %p145
      %p147 = scmp.ne.s32.totalorder %s139, %s142
      %p148 = scmp.eq.s32.totalorder %s19, 0
      %p149 = por %p147, %p148
      %p150 = scmp.ne.s32.totalorder %s139, %s142
      %p151 = scmp.eq.s32.totalorder %s24, 2
      %p152 = por %p150, %p151
      %p153 = scmp.ne.s32.totalorder %s142, %s143
      %p154 = scmp.eq.s32.totalorder %s24, 0
      %p155 = por %p153, %p154
      %p156 = scmp.ne.s32.totalorder %s142, %s143
      %p157 = scmp.eq.s32.totalorder %s25, 2
      %p158 = por %p156, %p157
      %p160 = scmp.ne.s32.totalorder %s143, %s159
      %p161 = scmp.eq.s32.totalorder %s25, 0
      %p162 = por %p160, %p161
      %s163 = ssub.s32 %s19, %s26
      %p164 = scmp.eq.s32.totalorder %s163, 0
      %s166 = sadd.s32 %s165, 1
      %s167 = scalar_select %p164, %s165, %s166
      %p170 = pneg %p164
      %p171 = scmp.eq.s32.totalorder %s19, 2
      %p172 = por %p170, %p171
      %p173 = scmp.ne.s32.totalorder %s165, %s168
      %p174 = scmp.eq.s32.totalorder %s19, 0
      %p175 = por %p173, %p174
      %p176 = scmp.ne.s32.totalorder %s165, %s168
      %p177 = scmp.eq.s32.totalorder %s24, 2
      %p178 = por %p176, %p177
      %p179 = scmp.ne.s32.totalorder %s168, %s169
      %p180 = scmp.eq.s32.totalorder %s24, 0
      %p181 = por %p179, %p180
      %p182 = scmp.ne.s32.totalorder %s168, %s169
      %p183 = scmp.eq.s32.totalorder %s25, 2
      %p184 = por %p182, %p183
      %p186 = scmp.ne.s32.totalorder %s169, %s185
      %p187 = scmp.eq.s32.totalorder %s25, 0
      %p188 = por %p186, %p187
      %p189 = scmp.le.s32.totalorder 1, %s19
      %p190 = scmp.lt.s32.totalorder %s19, 4
      %p191 = pnand %p189, %p190
      %p192 = pneg %p191
      // Predicated region
      $region9: #{tpu_custom_call.1} parent=5 // pred_check
        _
      $region10: #{tpu_custom_call.1} parent=5 // pred_check_branch
        %194 = sbr.rel (%p191) target = $region12
      $region11: #{tpu_custom_call.1} parent=5 // pred_region
        %s195 = ssub.s32 %s19, 1
        // Predicated region
        $region13: #{tpu_custom_call.1} parent=11 // pred_check
          %p196 = pneg %p66
        $region14: #{tpu_custom_call.1} parent=11 // pred_check_branch
          %198 = sbr.rel (%p196) target = $region16
        $region15: #{tpu_custom_call.1} parent=11 // pred_region
          _
        $region16: #{tpu_custom_call.1} parent=11 // pred_fallthru
          _
        // Predicated region
        $region17: #{tpu_custom_call.1} parent=11 // pred_check
          %p199 = pneg %p87
        $region18: #{tpu_custom_call.1} parent=11 // pred_check_branch
          %201 = sbr.rel (%p199) target = $region20
        $region19: #{tpu_custom_call.1} parent=11 // pred_region
          _
        $region20: #{tpu_custom_call.1} parent=11 // pred_fallthru
          _
        // Predicated region
        $region21: #{tpu_custom_call.1} parent=11 // pred_check
          %p202 = pneg %p108
        $region22: #{tpu_custom_call.1} parent=11 // pred_check_branch
          %204 = sbr.rel (%p202) target = $region24
        $region23: #{tpu_custom_call.1} parent=11 // pred_region
          _
        $region24: #{tpu_custom_call.1} parent=11 // pred_fallthru
          _
        // Predicated region
        $region25: #{tpu_custom_call.1} parent=11 // pred_check
          %p205 = pneg %p129
        $region26: #{tpu_custom_call.1} parent=11 // pred_check_branch
          %207 = sbr.rel (%p205) target = $region28
        $region27: #{tpu_custom_call.1} parent=11 // pred_region
          _
        $region28: #{tpu_custom_call.1} parent=11 // pred_fallthru
          _
      $region12: #{tpu_custom_call.1} parent=5 // pred_fallthru
        _
      %p208 = scmp.lt.s32.totalorder %s19, 3
      // Predicated region
      $region29: #{tpu_custom_call.1} parent=5 // pred_check
        %p209 = pneg %p208
      $region30: #{tpu_custom_call.1} parent=5 // pred_check_branch
        %211 = sbr.rel (%p209) target = $region32
      $region31: #{tpu_custom_call.1} parent=5 // pred_region
        // Predicated region
        $region33: #{tpu_custom_call.1} parent=31 // pred_check
          %p212 = pneg %p39
        $region34: #{tpu_custom_call.1} parent=31 // pred_check_branch
          %214 = sbr.rel (%p212) target = $region36
        $region35: #{tpu_custom_call.1} parent=31 // pred_region
          %s215 = smul.u32 2, %s19
          %p216 = scmp.lt.s32.totalorder %s215, 5
          %s217 = scalar_select %p216, %s215, 5
          %s218 = smul.addr %s217, 8
          %s219 = scalar_lea.vmem %s0, %s218
          %s220 = smul.u32 2, %s19
        $region36: #{tpu_custom_call.1} parent=31 // pred_fallthru
          _
      $region32: #{tpu_custom_call.1} parent=5 // pred_fallthru
        _
      %p221 = scmp.le.s32.totalorder 1, %s19
      %p222 = scmp.lt.s32.totalorder %s19, 4
      %p223 = pnand %p221, %p222
      %p224 = pneg %p223
      // Predicated region
      $region37: #{tpu_custom_call.1} parent=5 // pred_check
        _
      $region38: #{tpu_custom_call.1} parent=5 // pred_check_branch
        %226 = sbr.rel (%p223) target = $region40
      $region39: #{tpu_custom_call.1} parent=5 // pred_region
        %s227 = ssub.s32 %s19, 1
        %s228 = smul.u32 2, %s24
        %p229 = scmp.lt.s32.totalorder %s228, 5
        %s230 = scalar_select %p229, %s228, 5
        %s231 = smul.addr %s230, 8
        %s232 = scalar_lea.vmem %s0, %s231
        %p233 = pneg %p45
        %p234 = pneg %p42
        %p235 = pneg %p66
        %p236 = pneg %p63
        %p237 = pneg %p87
        %p238 = pneg %p84
        %p239 = pneg %p108
        %p240 = pneg %p105
        %p241 = pneg %p129
        %p242 = pneg %p126
        %p243 = pneg %p155
        %p244 = pneg %p152
        %s245 = sand.u32 %s142, 1
        %s246 = scalar_lea.sflag [#allocation3], %s245
        %s247 = sand.u32 %s142, 1
        %s248 = smul.addr %s247, 16
        %s249 = scalar_lea.vmem [#allocation2], %s248
        %p250 = pneg %p181
        %p251 = pneg %p178
        %s252 = sand.u32 %s168, 1
        %s253 = scalar_lea.sflag [#allocation5], %s252
        %s254 = sand.u32 %s168, 1
        %s255 = smul.addr %s254, 8
        %s256 = scalar_lea.vmem [#allocation4], %s255
        %s257 = smul.u32 2, %s24
        %p258 = scmp.lt.s32.totalorder %s257, 5
        %s259 = scalar_select %p258, %s257, 5
        %s260 = smul.addr %s259, 8
        %s261 = scalar_lea.vmem %s0, %s260
        %s262 = smul.u32 2, %s24
        %s263 = smul.u32 2, %s24
        %v264 = vld [vmem:[%s261] sm:$0xff]
        %v265 = vld [vmem:[%s261 + $0x8] sm:$0xff]
        %v266 = vld [vmem:[%s1] sm:$0xff]
        %v267 = vld [vmem:[%s1 + $0x8] sm:$0xff]
        %v268 = vld [vmem:[%s1 + $0x10] sm:$0xff]
        %v269 = vld [vmem:[%s1 + $0x18] sm:$0xff]
        %v270 = vld [vmem:[%s2] sm:$0x1]
        %v272 = vperm.slane %v270, 0
        %vm274 = vcmask 261120
        %v276 = vsel %vm274, %v264, 0
        %v279 = vsel %vm274, %v265, 0
        %281 = vmatpush.msra.mxu0 0.0
        %282 = vmatpush.msra.mxu0 0.0
        %283 = vmatpush.msra.mxu0 0.0
        %284 = vmatpush.msra.mxu0 0.0
        %285 = vmatpush.msra.mxu0 0.0
        %286 = vmatpush.msra.mxu0 0.0
        %287 = vmatpush.msra.mxu0 0.0
        %288 = vmatpush.msra.mxu0 0.0
        %289 = vmatpush.msra.mxu0 0.0
        %290 = vmatpush.msra.mxu0 0.0
        %291 = vmatpush.msra.mxu0 0.0
        %292 = vmatpush.msra.mxu0 0.0
        %293 = vmatpush.msra.mxu0 %v269
        %294 = vmatpush.msra.mxu0 %v268
        %295 = vmatpush.msra.mxu0 %v267
        %296 = vmatpush.msra.mxu0 %v266
        %297 = vmatmul.f32.gmra.mxu0 %v276
        %v298 = vpop.f32.mrf.mxu0
        %v299 = vadd.f32 %v272, %v298
        %300 = vmatmul.f32.gmra.mxu0 %v279
        %v301 = vpop.f32.mrf.mxu0
        %v302 = vadd.f32 %v272, %v301
        %303 = vdwg.mxu0
        %v304 = vld [vmem:[%s3] sm:$0xff]
        %v305 = vld [vmem:[%s3 + $0x8] sm:$0xff]
        %v306 = vld [vmem:[%s3 + $0x10] sm:$0xff]
        %v307 = vld [vmem:[%s3 + $0x18] sm:$0xff]
        %v308 = vld [vmem:[%s4] sm:$0x1]
        %v310 = vperm.slane %v308, 0
        %312 = vmatpush.msra.mxu0 0.0
        %313 = vmatpush.msra.mxu0 0.0
        %314 = vmatpush.msra.mxu0 0.0
        %315 = vmatpush.msra.mxu0 0.0
        %316 = vmatpush.msra.mxu0 0.0
        %317 = vmatpush.msra.mxu0 0.0
        %318 = vmatpush.msra.mxu0 0.0
        %319 = vmatpush.msra.mxu0 0.0
        %320 = vmatpush.msra.mxu0 0.0
        %321 = vmatpush.msra.mxu0 0.0
        %322 = vmatpush.msra.mxu0 0.0
        %323 = vmatpush.msra.mxu0 0.0
        %324 = vmatpush.msra.mxu0 %v307
        %325 = vmatpush.msra.mxu0 %v306
        %326 = vmatpush.msra.mxu0 %v305
        %327 = vmatpush.msra.mxu0 %v304
        %328 = vmatmul.f32.gmra.mxu0 %v276
        %v329 = vpop.f32.mrf.mxu0
        %v330 = vadd.f32 %v310, %v329
        %331 = vmatmul.f32.gmra.mxu0 %v279
        %v332 = vpop.f32.mrf.mxu0
        %v333 = vadd.f32 %v310, %v332
        %334 = vdwg.mxu0
        %335 = vst [vmem:[%s249] sm:$0xff] %v299
        %336 = vst [vmem:[%s249 + $0x8] sm:$0xff] %v302
        %337 = vmax.xlane.f32.xlu0 %v299
        %v338 = vpop.xlane.xlu0 %337
        %339 = vmax.xlane.f32.xlu0 %v302
        %v340 = vpop.xlane.xlu0 %339
        %v341 = vsub.f32 %v299, %v338
        %v342 = vsub.f32 %v302, %v340
        %v343 = vmul.f32 %v341, 1.442695
        %v344 = vpow.pop %v343
        %v345 = vmul.f32 %v342, 1.442695
        %v346 = vpow.pop %v345
        %347 = vadd.xlane.f32.xlu0 %v344
        %v348 = vpop.xlane.xlu0 %347
        %349 = vadd.xlane.f32.xlu0 %v346
        %v350 = vpop.xlane.xlu0 %349
        %v351 = vlog2.pop %v348
        %v352 = vmul.f32 %v351, 0.6931472
        %v353 = vlog2.pop %v350
        %v354 = vmul.f32 %v353, 0.6931472
        %v355 = vsub.f32 %v341, %v352
        %v356 = vsub.f32 %v342, %v354
        %357 = vmax.xlane.f32.xlu0 %v330
        %v358 = vpop.xlane.xlu0 %357
        %359 = vmax.xlane.f32.xlu0 %v333
        %v360 = vpop.xlane.xlu0 %359
        %v361 = vsub.f32 %v330, %v358
        %v362 = vsub.f32 %v333, %v360
        %v363 = vmul.f32 %v361, 1.442695
        %v364 = vpow.pop %v363
        %v365 = vmul.f32 %v362, 1.442695
        %v366 = vpow.pop %v365
        %367 = vadd.xlane.f32.xlu0 %v364
        %v368 = vpop.xlane.xlu0 %367
        %369 = vadd.xlane.f32.xlu0 %v366
        %v370 = vpop.xlane.xlu0 %369
        %v371 = vlog2.pop %v368
        %v372 = vmul.f32 %v371, 0.6931472
        %v373 = vlog2.pop %v370
        %v374 = vmul.f32 %v373, 0.6931472
        %v375 = vsub.f32 %v361, %v372
        %v376 = vsub.f32 %v362, %v374
        %v377 = vsub.f32 %v375, %v355
        %v378 = vsub.f32 %v376, %v356
        %v379 = vmul.f32 %v364, %v377
        %v380 = vmul.f32 %v366, %v378
        %381 = vadd.xlane.f32.xlu0 %v379
        %v382 = vpop.xlane.xlu0 %381
        %383 = vadd.xlane.f32.xlu0 %v380
        %v384 = vpop.xlane.xlu0 %383
        %v385 = vrcp.pop %v368
        %v386 = vrcp.pop %v370
        %v387 = vmul.f32 %v382, %v385
        %v388 = vmul.f32 %v384, %v386
        %vm389 = vcmask 7168
        %v390 = vsel %vm389, %v387, 0.0
        %v391 = vsel %vm389, %v388, 0.0
        %v392 = vadd.f32 %v390, %v391
        %393 = vadd.xlane.f32.xlu0 %v392
        %v394 = vpop.xlane.xlu0 %393
        %v395 = vrot.slane %v394, 4
        %v396 = vadd.f32 %v394, %v395
        %v397 = vrot.slane %v396, 2
        %v398 = vadd.f32 %v396, %v397
        %v399 = vrot.slane %v398, 1
        %v400 = vadd.f32 %v398, %v399
        %s401 = vtos %v400
        %v402 = vstv %s401
        %403 = vst [vmem:[%s256] sm:$0xff] %v402
        %s404 = sand.u32 %s142, 1
        %s405 = scalar_lea.sflag [#allocation3], %s404
        %s406 = sand.u32 %s142, 1
        %s407 = smul.addr %s406, 16
        %s408 = scalar_lea.vmem [#allocation2], %s407
        %s409 = sand.u32 %s168, 1
        %s410 = scalar_lea.sflag [#allocation5], %s409
        %s411 = sand.u32 %s168, 1
        %s412 = smul.addr %s411, 8
        %s413 = scalar_lea.vmem [#allocation4], %s412
        // Predicated region
        $region41: #{tpu_custom_call.1} parent=39 // pred_check
          %p414 = pneg %p152
        $region42: #{tpu_custom_call.1} parent=39 // pred_check_branch
          %416 = sbr.rel (%p414) target = $region44
        $region43: #{tpu_custom_call.1} parent=39 // pred_region
          %s417 = smul.u32 2, %s24
          %419 = vsyncadd %s405, 0
          %s420 = smul.addr %s417, 8
          %s421 = scalar_lea.hbm %s5, %s420
          %s422 = sshll.u32 %s408, 4
          %s423 = int_to_ptr.vmem [resolvable:$true] %s422
          %s424 = sshll.u32 %s421, 4
          %s425 = int_to_ptr.hbm [resolvable:$true] %s424
          %430 = dma.vmem_to_hbm [thread:$0]  %s423, 256, %s425, %s405, 128, 128, 8
        $region44: #{tpu_custom_call.1} parent=39 // pred_fallthru
          _
        // Predicated region
        $region45: #{tpu_custom_call.1} parent=39 // pred_check
          %p431 = pneg %p178
        $region46: #{tpu_custom_call.1} parent=39 // pred_check_branch
          %433 = sbr.rel (%p431) target = $region48
        $region47: #{tpu_custom_call.1} parent=39 // pred_region
          %435 = vsyncadd %s410, 0
          %s436 = smul.addr %s24, 8
          %s437 = scalar_lea.hbm %s6, %s436
          %s439 = sshll.u32 %s413, 4
          %s440 = int_to_ptr.vmem [resolvable:$true] %s439
          %s441 = sshll.u32 %s437, 4
          %s442 = int_to_ptr.hbm [resolvable:$true] %s441
          %444 = dma.vmem_to_hbm [thread:$0]  %s440, 128, %s442, %s410
        $region48: #{tpu_custom_call.1} parent=39 // pred_fallthru
          _
      $region40: #{tpu_custom_call.1} parent=5 // pred_fallthru
        _
      %p445 = scmp.le.s32.totalorder 2, %s19
      // Predicated region
      $region49: #{tpu_custom_call.1} parent=5 // pred_check
        %p446 = pneg %p445
      $region50: #{tpu_custom_call.1} parent=5 // pred_check_branch
        %448 = sbr.rel (%p446) target = $region52
      $region51: #{tpu_custom_call.1} parent=5 // pred_region
        %s449 = ssub.s32 %s19, 2
        // Predicated region
        $region53: #{tpu_custom_call.1} parent=51 // pred_check
          %p450 = pneg %p158
        $region54: #{tpu_custom_call.1} parent=51 // pred_check_branch
          %452 = sbr.rel (%p450) target = $region56
        $region55: #{tpu_custom_call.1} parent=51 // pred_region
          %s453 = sand.u32 %s143, 1
          %s454 = scalar_lea.sflag [#allocation3], %s453
          %s455 = sand.u32 %s143, 1
          %s456 = smul.addr %s455, 16
          %s457 = scalar_lea.vmem [#allocation2], %s456
          %459 = dma.done %s454, 256
        $region56: #{tpu_custom_call.1} parent=51 // pred_fallthru
          _
        // Predicated region
        $region57: #{tpu_custom_call.1} parent=51 // pred_check
          %p460 = pneg %p184
        $region58: #{tpu_custom_call.1} parent=51 // pred_check_branch
          %462 = sbr.rel (%p460) target = $region60
        $region59: #{tpu_custom_call.1} parent=51 // pred_region
          %s463 = sand.u32 %s169, 1
          %s464 = scalar_lea.sflag [#allocation5], %s463
          %s465 = sand.u32 %s169, 1
          %s466 = smul.addr %s465, 8
          %s467 = scalar_lea.vmem [#allocation4], %s466
          %469 = dma.done %s464, 128
        $region60: #{tpu_custom_call.1} parent=51 // pred_fallthru
          _
      $region52: #{tpu_custom_call.1} parent=5 // pred_fallthru
        _
    $region6: #{tpu_custom_call.1} parent=1 // loop_footer
      %s23 = sadd.s32 1, %s19
    $region7: #{tpu_custom_call.1} parent=1 // loop_footer_branch
      %18 = sbr.rel target = $region3
    $region8: #{tpu_custom_call.1} parent=1 // loop_exit
      _
    %470 = vsyncpa [#allocation3], 1
    %s471 = scalar_lea.sflag [#allocation3], 1
    %472 = vsyncpa %s471, 1
    %473 = vsyncpa [#allocation5], 1
    %s474 = scalar_lea.sflag [#allocation5], 1
    %475 = vsyncpa %s474, 1

</llo_original>
